<compile_context>
chip_gen: v5e
topology: v5e:2x2
jax: 0.10.0
libtpu: 0.0.40
codegen_flags: <defaults>
</compile_context>

<pallas_src>
import functools

import jax
import jax.numpy as jnp
from jax import lax
from jax.experimental import pallas as pl
from jax.experimental.pallas import tpu as pltpu


def _round_up(x, mult):
    return ((x + mult - 1) // mult) * mult


def _pick_tiles(m, k, n):
    """Tile sizes: large enough to amortize grid overhead, small enough for VMEM.

    Worst-case f32 footprint with (512, 1024, 512):
      x 2*tm*tk*4 = 4 MiB, w 2*tn*tk*4 = 4 MiB, out 2*tm*tn*4 = 2 MiB,
      acc tm*tn*4 = 1 MiB  ->  ~11 MiB total.
    """
    tm = min(512, _round_up(m, 8))      # sublane-aligned
    tk = min(1024, _round_up(k, 128))   # lane-aligned contraction
    tn = min(512, _round_up(n, 128))    # lane-dense output
    return tm, tk, tn


def _make_kernel(use_bias, multi_k):
    """Builds the kernel body; use_bias / multi_k are static Python flags."""

    def _dot(x, w):
        # x: (tm, tk), w: (tn, tk)  -> (tm, tn), contracting K with K (trans_b).
        return lax.dot_general(
            x, w,
            dimension_numbers=(((1,), (1,)), ((), ())),
            preferred_element_type=jnp.float32,
        )

    if multi_k:
        def kernel(*refs):
            if use_bias:
                x_ref, w_ref, b_ref, o_ref, acc_ref = refs
            else:
                x_ref, w_ref, o_ref, acc_ref = refs
            k = pl.program_id(2)

            @pl.when(k == 0)
            def _():
                acc_ref[...] = jnp.zeros_like(acc_ref)

            acc_ref[...] += _dot(x_ref[...], w_ref[...])

            @pl.when(k == pl.num_programs(2) - 1)
            def _():
                r = acc_ref[...]
                if use_bias:
                    r = r + b_ref[...].astype(jnp.float32)
                o_ref[...] = r.astype(o_ref.dtype)
    else:
        def kernel(*refs):
            if use_bias:
                x_ref, w_ref, b_ref, o_ref = refs
            else:
                x_ref, w_ref, o_ref = refs
            r = _dot(x_ref[...], w_ref[...])
            if use_bias:
                r = r + b_ref[...].astype(jnp.float32)
            o_ref[...] = r.astype(o_ref.dtype)

    return kernel


@functools.partial(jax.jit, static_argnames=("use_bias",))
def linear_norm_forward(x, weight, bias, use_bias=True):
    """Pallas implementation of LinearNorm.forward.

    x:      (..., in_channels)
    weight: (out_channels, in_channels)   -- PyTorch nn.Linear convention
    bias:   (out_channels,)
    returns (..., out_channels)
    """
    in_channels = x.shape[-1]
    out_channels = weight.shape[0]
    lead_shape = x.shape[:-1]

    m = 1
    for d in lead_shape:
        m *= d
    x2d = x.reshape(m, in_channels)

    tm, tk, tn = _pick_tiles(m, in_channels, out_channels)
    m_pad = _round_up(m, tm)
    k_pad = _round_up(in_channels, tk)
    n_pad = _round_up(out_channels, tn)

    # Zero-pad to tile-aligned shapes (padded K contributes nothing; padded
    # M/N rows/cols are sliced off below).
    if (m_pad != m) or (k_pad != in_channels):
        x_p = jnp.pad(x2d, ((0, m_pad - m), (0, k_pad - in_channels)))
    else:
        x_p = x2d
    if (n_pad != out_channels) or (k_pad != in_channels):
        w_p = jnp.pad(weight, ((0, n_pad - out_channels), (0, k_pad - in_channels)))
    else:
        w_p = weight

    multi_k = (k_pad // tk) > 1
    kernel = _make_kernel(use_bias, multi_k)

    itemsize = jnp.dtype(x.dtype).itemsize
    cost = pl.CostEstimate(
        flops=2 * m_pad * n_pad * k_pad,
        transcendentals=0,
        bytes_accessed=(m_pad * k_pad + n_pad * k_pad + m_pad * n_pad + n_pad) * itemsize,
    )

    out_shape = jax.ShapeDtypeStruct((m_pad, n_pad), x.dtype)

    operands = [x_p, w_p]
    if use_bias:
        b_p = bias
        if n_pad != out_channels:
            b_p = jnp.pad(bias, (0, n_pad - out_channels))
        operands.append(b_p.reshape(1, n_pad))

    if multi_k:
        grid = (m_pad // tm, n_pad // tn, k_pad // tk)
        x_spec = pl.BlockSpec((tm, tk), lambda i, j, k: (i, k))
        w_spec = pl.BlockSpec((tn, tk), lambda i, j, k: (j, k))
        b_spec = pl.BlockSpec((1, tn), lambda i, j, k: (0, j))
        o_spec = pl.BlockSpec((tm, tn), lambda i, j, k: (i, j))
        scratch = [pltpu.VMEM((tm, tn), jnp.float32)]
        semantics = ("parallel", "parallel", "arbitrary")
    else:
        grid = (m_pad // tm, n_pad // tn)
        x_spec = pl.BlockSpec((tm, tk), lambda i, j: (i, 0))
        w_spec = pl.BlockSpec((tn, tk), lambda i, j: (j, 0))
        b_spec = pl.BlockSpec((1, tn), lambda i, j: (0, j))
        o_spec = pl.BlockSpec((tm, tn), lambda i, j: (i, j))
        scratch = []
        semantics = ("parallel", "parallel")

    in_specs = [x_spec, w_spec] + ([b_spec] if use_bias else [])

    compiler_params = pltpu.CompilerParams(
        dimension_semantics=semantics,
        vmem_limit_bytes=48 * 1024 * 1024,  # far above the ~11 MiB footprint
    )

    out2d = pl.pallas_call(
        kernel,
        out_shape=out_shape,
        grid_spec=pltpu.PrefetchScalarGridSpec(
            num_scalar_prefetch=0,
            grid=grid,
            in_specs=in_specs,
            out_specs=o_spec,
            scratch_shapes=scratch,
        ),
        compiler_params=compiler_params,
        cost_estimate=cost,
    )(*operands)

    out2d = out2d[:m, :out_channels]
    return out2d.reshape(*lead_shape, out_channels)


def init_linear_params(key, in_channels, out_channels, dtype=jnp.float32):
    """Deterministic init matching torch.nn.Linear default (uniform ±1/sqrt(in))."""
    kw, kb = jax.random.split(key)
    bound = 1.0 / (in_channels ** 0.5)
    weight = jax.random.uniform(
        kw, (out_channels, in_channels), dtype=dtype, minval=-bound, maxval=bound
    )
    bias = jax.random.uniform(
        kb, (out_channels,), dtype=dtype, minval=-bound, maxval=bound
    )
    return weight, bias


if __name__ == "__main__":
    # TODO(synk): spectral_norm=False path only; power-iteration weight
    # normalization is a parameterization of the weight, not a forward hot path.
    key = jax.random.PRNGKey(0)
    k_x, k_p, k_x2, k_p2 = jax.random.split(key, 4)

    # --- small case (single-K-tile path) ------------------------------------
    batch, seq, in_channels, out_channels = 2, 8, 32, 64
    x = jax.random.normal(k_x, (batch, seq, in_channels), dtype=jnp.float32)
    weight, bias = init_linear_params(k_p, in_channels, out_channels)

    out = jax.block_until_ready(linear_norm_forward(x, weight, bias, use_bias=True))
    ref = x @ weight.T + bias
    assert out.shape == (batch, seq, out_channels)
    assert jnp.allclose(out, ref, atol=1e-5, rtol=1e-5)

    # no-bias path
    out_nb = jax.block_until_ready(linear_norm_forward(x, weight, bias, use_bias=False))
    assert jnp.allclose(out_nb, x @ weight.T, atol=1e-5, rtol=1e-5)

    # --- large-K case (multi-K-tile accumulator path) -----------------------
    in2, out2 = 2048, 256
    x2 = jax.random.normal(k_x2, (batch, seq, in2), dtype=jnp.float32)
    w2, b2 = init_linear_params(k_p2, in2, out2)

    out_big = jax.block_until_ready(linear_norm_forward(x2, w2, b2, use_bias=True))
    ref_big = x2 @ w2.T + b2
    assert out_big.shape == (batch, seq, out2)
    # MXU f32 matmuls at default precision accumulate in reduced precision;
    # compare via relative Frobenius error instead of elementwise exactness.
    rel_err = jnp.linalg.norm(out_big - ref_big) / (jnp.linalg.norm(ref_big) + 1e-12)
    assert float(rel_err) < 2e-2

    print("KERNEL_OK")
</pallas_src>

<mosaic_0001>
module attributes {stable_mosaic.version = 11 : i64} {
  func.func @kernel(%arg0: i32, %arg1: i32, %arg2: memref<16x128xf32, #tpu.memory_space<vmem>>, %arg3: memref<128x128xf32, #tpu.memory_space<vmem>>, %arg4: memref<1x128xf32, #tpu.memory_space<vmem>>, %arg5: memref<16x128xf32, #tpu.memory_space<vmem>>) attributes {dimension_semantics = [#tpu.dimension_semantics<parallel>, #tpu.dimension_semantics<parallel>], iteration_bounds = array<i64: 1, 1>, scalar_prefetch = 0 : i64, scratch_operands = 0 : i64, tpu.core_type = #tpu.core_type<tc>, window_params = [{transform_indices = @transform_0, window_bounds = array<i64: 16, 128>}, {transform_indices = @transform_1, window_bounds = array<i64: 128, 128>}, {transform_indices = @transform_2, window_bounds = array<i64: 1, 128>}, {transform_indices = @transform_3, window_bounds = array<i64: 16, 128>}]} {
    %c0 = arith.constant 0 : index
    %c0_0 = arith.constant 0 : index
    %0 = vector.load %arg2[%c0, %c0_0] : memref<16x128xf32, #tpu.memory_space<vmem>>, vector<16x128xf32>
    %c0_1 = arith.constant 0 : index
    %c0_2 = arith.constant 0 : index
    %1 = vector.load %arg3[%c0_1, %c0_2] : memref<128x128xf32, #tpu.memory_space<vmem>>, vector<128x128xf32>
    %cst = arith.constant dense<0.000000e+00> : vector<16x128xf32>
    %2 = tpu.matmul %0, %1, %cst {dimension_numbers = #tpu.dot_dimension_numbers<[1], [1], [0], [0], [0, 0, 1, 0], [], []>} : vector<16x128xf32>, vector<128x128xf32>, vector<16x128xf32> -> vector<16x128xf32>
    %c0_3 = arith.constant 0 : index
    %c0_4 = arith.constant 0 : index
    %3 = vector.load %arg4[%c0_3, %c0_4] : memref<1x128xf32, #tpu.memory_space<vmem>>, vector<1x128xf32>
    %4 = vector.broadcast %3 : vector<1x128xf32> to vector<16x128xf32>
    %5 = arith.addf %2, %4 : vector<16x128xf32>
    %c0_5 = arith.constant 0 : index
    %c0_6 = arith.constant 0 : index
    %6 = vector.load %arg5[%c0_5, %c0_6] : memref<16x128xf32, #tpu.memory_space<vmem>>, vector<16x128xf32>
    tpu.vector_store %arg5[%c0_5, %c0_6], %5 {strides = array<i32>} : memref<16x128xf32, #tpu.memory_space<vmem>>, vector<16x128xf32>,
    return
  }
  func.func @transform_0(%arg0: i32, %arg1: i32) -> (i32, i32) {
    %c0_i32 = arith.constant 0 : i32
    %c0_i32_0 = arith.constant 0 : i32
    return %arg0, %c0_i32 : i32, i32
  }
  func.func @transform_1(%arg0: i32, %arg1: i32) -> (i32, i32) {
    %c0_i32 = arith.constant 0 : i32
    %c0_i32_0 = arith.constant 0 : i32
    return %arg1, %c0_i32 : i32, i32
  }
  func.func @transform_2(%arg0: i32, %arg1: i32) -> (i32, i32) {
    %c0_i32 = arith.constant 0 : i32
    %c0_i32_0 = arith.constant 0 : i32
    return %c0_i32, %arg1 : i32, i32
  }
  func.func @transform_3(%arg0: i32, %arg1: i32) -> (i32, i32) {
    %c0_i32 = arith.constant 0 : i32
    return %arg0, %arg1 : i32, i32
  }
}

</mosaic_0001>

<llo_original>
// kernel: linear_norm_forward.1
$region0: #{linear_norm_forward.1}
  #allocation0 [shape = 'u32[]', space=smem, size = 0x4, offset = 0x4, fixed_abs, tag = 'smem constant byte address 0x4 - core index']
  #allocation1 [shape = 'u32[72,128]{1,0:T(1,128)}', space=vmem, size = 0x9000, scoped, tag = 'internal scratch']
  %s0 = inlined_call_operand.vmem [shape: f32[16,128], index: 0, kind: input, shape index: {}]
  %s1 = inlined_call_operand.vmem [shape: f32[128,128], index: 1, kind: input, shape index: {}]
  %s2 = inlined_call_operand.vmem [shape: f32[1,128], index: 2, kind: input, shape index: {}]
  %s3 = inlined_call_operand.vmem [shape: f32[16,128], index: 3, kind: output, shape index: {}]
  %s4 = sld [smem:[#allocation0]]
  $region22: #{linear_norm_forward.1} parent=0
    _
  %s6 = ssub.s32 1, %s4
  %s7 = scalar_select 0, %s6, %s4
  // Predicated region
  $region2: #{linear_norm_forward.1} parent=0 // pred_check
    _
  $region3: #{linear_norm_forward.1} parent=0 // pred_check_branch
    %9 = sbr.rel (0) target = $region5
  $region4: #{linear_norm_forward.1} parent=0 // pred_region
    _
  $region5: #{linear_norm_forward.1} parent=0 // pred_fallthru
    _
  // Predicated region
  $region6: #{linear_norm_forward.1} parent=0 // pred_check
    _
  $region7: #{linear_norm_forward.1} parent=0 // pred_check_branch
    %11 = sbr.rel (0) target = $region9
  $region8: #{linear_norm_forward.1} parent=0 // pred_region
    _
  $region9: #{linear_norm_forward.1} parent=0 // pred_fallthru
    _
  // Predicated region
  $region10: #{linear_norm_forward.1} parent=0 // pred_check
    _
  $region11: #{linear_norm_forward.1} parent=0 // pred_check_branch
    %13 = sbr.rel (0) target = $region13
  $region12: #{linear_norm_forward.1} parent=0 // pred_region
    _
  $region13: #{linear_norm_forward.1} parent=0 // pred_fallthru
    _
  %v14 = vld [vmem:[%s0] sm:$0xff]
  %v15 = vld [vmem:[%s0 + $0x8] sm:$0xff]
  %v16 = vld [vmem:[%s1] sm:$0xff]
  %v17 = vld [vmem:[%s1 + $0x8] sm:$0xff]
  %v18 = vld [vmem:[%s1 + $0x10] sm:$0xff]
  %v19 = vld [vmem:[%s1 + $0x18] sm:$0xff]
  %v20 = vld [vmem:[%s1 + $0x20] sm:$0xff]
  %v21 = vld [vmem:[%s1 + $0x28] sm:$0xff]
  %v22 = vld [vmem:[%s1 + $0x30] sm:$0xff]
  %v23 = vld [vmem:[%s1 + $0x38] sm:$0xff]
  %v24 = vld [vmem:[%s1 + $0x40] sm:$0xff]
  %v25 = vld [vmem:[%s1 + $0x48] sm:$0xff]
  %v26 = vld [vmem:[%s1 + $0x50] sm:$0xff]
  %v27 = vld [vmem:[%s1 + $0x58] sm:$0xff]
  %v28 = vld [vmem:[%s1 + $0x60] sm:$0xff]
  %v29 = vld [vmem:[%s1 + $0x68] sm:$0xff]
  %v30 = vld [vmem:[%s1 + $0x70] sm:$0xff]
  %v31 = vld [vmem:[%s1 + $0x78] sm:$0xff]
  %v32 = vld [vmem:[%s2] sm:$0x1]
  %v34 = vperm.slane %v32, 0
  %36 = vmatpush.xpose.msra.mxu0 %v31
  %37 = vmatpush.xpose.msra.mxu0 %v30
  %38 = vmatpush.xpose.msra.mxu0 %v29
  %39 = vmatpush.xpose.msra.mxu0 %v28
  %40 = vmatpush.xpose.msra.mxu0 %v27
  %41 = vmatpush.xpose.msra.mxu0 %v26
  %42 = vmatpush.xpose.msra.mxu0 %v25
  %43 = vmatpush.xpose.msra.mxu0 %v24
  %44 = vmatpush.xpose.msra.mxu0 %v23
  %45 = vmatpush.xpose.msra.mxu0 %v22
  %46 = vmatpush.xpose.msra.mxu0 %v21
  %47 = vmatpush.xpose.msra.mxu0 %v20
  %48 = vmatpush.xpose.msra.mxu0 %v19
  %49 = vmatpush.xpose.msra.mxu0 %v18
  %50 = vmatpush.xpose.msra.mxu0 %v17
  %51 = vmatpush.xpose.msra.mxu0 %v16
  %52 = vmatmul.f32.gmra.mxu0 %v14
  %v53 = vpop.f32.mrf.mxu0
  %v54 = vadd.f32 %v34, %v53
  %55 = vmatmul.f32.gmra.mxu0 %v15
  %v56 = vpop.f32.mrf.mxu0
  %v57 = vadd.f32 %v34, %v56
  %58 = vdwg.mxu0
  %59 = vst [vmem:[%s3] sm:$0xff] %v54
  %60 = vst [vmem:[%s3 + $0x8] sm:$0xff] %v57
  // Predicated region
  $region14: #{linear_norm_forward.1} parent=0 // pred_check
    _
  $region15: #{linear_norm_forward.1} parent=0 // pred_check_branch
    %62 = sbr.rel (0) target = $region17
  $region16: #{linear_norm_forward.1} parent=0 // pred_region
    _
  $region17: #{linear_norm_forward.1} parent=0 // pred_fallthru
    _
  // Predicated region
  $region18: #{linear_norm_forward.1} parent=0 // pred_check
    _
  $region19: #{linear_norm_forward.1} parent=0 // pred_check_branch
    %64 = sbr.rel (0) target = $region21
  $region20: #{linear_norm_forward.1} parent=0 // pred_region
    _
  $region21: #{linear_norm_forward.1} parent=0 // pred_fallthru
    _

</llo_original>
